<compile_context>
chip_gen: v6e
topology: v6e:2x2x1
jax: 0.10.0
libtpu: 0.0.40
codegen_flags: <defaults>
</compile_context>

<pallas_src>
import functools

import jax
import jax.numpy as jnp
from jax import lax
from jax.experimental import pallas as pl
from jax.experimental.pallas import tpu as pltpu


def _simloss_kernel(s_ref, t_ref, mob_ref, out_ref, cmax_ref, csum_ref, *,
                    matmul_dtype):
    p = pl.program_id(0)   # 0: row-softmax term + column stats, 1: column term
    i = pl.program_id(1)   # row-tile index

    @pl.when(jnp.logical_and(p == 0, i == 0))
    def _init():
        out_ref[...] = jnp.zeros_like(out_ref)
        cmax_ref[...] = jnp.full_like(cmax_ref, -jnp.inf)
        csum_ref[...] = jnp.zeros_like(csum_ref)

    s = s_ref[...].astype(matmul_dtype)      # (n,  m)   out1 (all rows, resident)
    t = t_ref[...].astype(matmul_dtype)      # (TM, m)   out2 row tile
    mob = mob_ref[...].astype(jnp.float32)   # (TM, n)   mobility rows (never transposed)

    # ip[a, b] = dot(t[a], s[b])  ==  (out2 @ out1.T) row tile; bf16 MXU, f32 acc.
    ip = lax.dot_general(t, s, (((1,), (1,)), ((), ())),
                         preferred_element_type=jnp.float32)   # (TM, n) f32

    def full_sum(x):   # (TM, n) -> (1, 1), explicit two-stage reduction
        return jnp.sum(jnp.sum(x, axis=-1, keepdims=True), axis=0, keepdims=True)

    @pl.when(p == 0)
    def _row_pass():
        # Term 1: softmax over rows (dim=-1); rows are complete in this tile.
        rmax = jnp.max(ip, axis=-1, keepdims=True)
        ex = jnp.exp(ip - rmax)
        inv = pl.reciprocal(jnp.sum(ex, axis=-1, keepdims=True), approx=True)
        phat = ex * inv
        out_ref[...] += full_sum(-mob * jnp.log(phat + 0.0001))

        # Online column statistics for term 2 (flash-style rescaling).
        tile_max = jnp.max(ip, axis=0, keepdims=True)            # (1, n)
        new_max = jnp.maximum(cmax_ref[...], tile_max)
        csum_ref[...] = (csum_ref[...] * jnp.exp(cmax_ref[...] - new_max)
                         + jnp.sum(jnp.exp(ip - new_max), axis=0, keepdims=True))
        cmax_ref[...] = new_max

    @pl.when(p == 1)
    def _col_pass():
        # Term 2: softmax over columns of the full score matrix, weighted by mob
        # (identical to PyTorch's row-softmax of ip.T weighted by mob.T).
        inv = pl.reciprocal(csum_ref[...], approx=True)          # (1, n)
        phat = jnp.exp(ip - cmax_ref[...]) * inv
        out_ref[...] += full_sum(-mob * jnp.log(phat + 0.0001))


def _pick_row_tile(n, vmem_budget_bytes):
    """Largest row tile (multiple of 8, divides n, <=512) within the VMEM budget."""
    if n % 8 != 0:
        return n                      # full array (block == full dims is always legal)
    # ~24 live bytes per score element per step (mob double-buffer + ip/exp/log temps)
    cap = max(8, vmem_budget_bytes // (24 * n))
    cap = min(int(cap), 512, n)
    tm = (cap // 8) * 8
    while tm >= 8 and n % tm != 0:
        tm -= 8
    return tm if tm >= 8 else n


def sim_loss(out1, out2, label, *, row_tile=None, matmul_dtype=jnp.bfloat16):
    """Pallas implementation of SimLoss.forward(out1, out2, label) -> scalar."""
    n, m = out1.shape
    assert out2.shape == (n, m) and label.shape == (n, n)

    # Generation-aware VMEM budget (v7x has 64 MiB per core; v5e/v6e 128 MiB).
    try:
        phys_vmem = int(pltpu.get_tpu_info().vmem_capacity_bytes)
    except Exception:
        phys_vmem = 64 * 1024 * 1024   # conservative (v7x-safe) fallback
    budget = phys_vmem // 2            # headroom for double-buffering / temporaries

    tm = row_tile if row_tile is not None else _pick_row_tile(n, budget)
    assert n % tm == 0, "row_tile must divide n"
    num_tiles = n // tm

    # Scoped-VMEM limit: defaults (16/32 MiB) are far below physical capacity.
    est = 2 * n * m * 4 + 2 * tm * m * 4 + 6 * tm * n * 4 + 2 * n * 4 + (1 << 20)
    vmem_limit = int(min(phys_vmem * 9 // 10, max(32 << 20, 2 * est)))

    itemsize = jnp.dtype(out1.dtype).itemsize
    cost = pl.CostEstimate(
        flops=int(4 * n * n * m + 12 * n * n),        # 2 matmul passes + epilogue
        transcendentals=int(4 * n * n),               # exp (x2) + log (x2) per score
        bytes_accessed=int(2 * (2 * n * m * itemsize) + 2 * n * n * 4 + 4),
    )

    res = pl.pallas_call(
        functools.partial(_simloss_kernel, matmul_dtype=matmul_dtype),
        out_shape=jax.ShapeDtypeStruct((1, 1), jnp.float32),
        grid_spec=pltpu.PrefetchScalarGridSpec(
            num_scalar_prefetch=0,
            grid=(2, num_tiles),                       # (pass, row tile)
            in_specs=[
                pl.BlockSpec((n, m), lambda p, i: (0, 0)),    # out1: all rows, resident
                pl.BlockSpec((tm, m), lambda p, i: (i, 0)),   # out2: row tile
                pl.BlockSpec((tm, n), lambda p, i: (i, 0)),   # mob:  row tile (no .T)
            ],
            out_specs=pl.BlockSpec((1, 1), lambda p, i: (0, 0)),  # resident scalar acc
            scratch_shapes=[
                pltpu.VMEM((1, n), jnp.float32),   # running column max
                pltpu.VMEM((1, n), jnp.float32),   # running column sum-exp
            ],
        ),
        compiler_params=pltpu.CompilerParams(
            dimension_semantics=("arbitrary", "arbitrary"),
            vmem_limit_bytes=vmem_limit,
        ),
        cost_estimate=cost,
    )(out1, out2, label)
    return res[0, 0]


def _sim_loss_ref(out1, out2, label, matmul_dtype=jnp.float32):
    """Pure-JAX reference mirroring the PyTorch code (optionally bf16 matmul inputs)."""
    s = out1.astype(matmul_dtype)
    t = out2.astype(matmul_dtype)
    ip1 = jnp.dot(t, s.T, preferred_element_type=jnp.float32)   # pairwise(out1, out2)
    ip2 = jnp.dot(s, t.T, preferred_element_type=jnp.float32)   # pairwise(out2, out1)

    def sm(x):
        e = jnp.exp(x - jnp.max(x, axis=-1, keepdims=True))
        return e / jnp.sum(e, axis=-1, keepdims=True)

    l1 = jnp.sum(-label * jnp.log(sm(ip1) + 0.0001))
    l2 = jnp.sum(-label.T * jnp.log(sm(ip2) + 0.0001))
    return l1 + l2


if __name__ == "__main__":
    key = jax.random.PRNGKey(0)

    # --- small single-tile case (shapes consistent with the module) ---
    n, m = 8, 32
    k1, k2, k3, k4, k5, k6 = jax.random.split(key, 6)
    out1 = jax.random.normal(k1, (n, m), dtype=jnp.float32)     # s_embeddings
    out2 = jax.random.normal(k2, (n, m), dtype=jnp.float32)     # t_embeddings
    label = jax.random.uniform(k3, (n, n), dtype=jnp.float32)   # mobility matrix

    loss = jax.block_until_ready(sim_loss(out1, out2, label))
    ref_matched = jax.block_until_ready(_sim_loss_ref(out1, out2, label, jnp.bfloat16))
    ref_exact = jax.block_until_ready(_sim_loss_ref(out1, out2, label, jnp.float32))
    assert jnp.allclose(loss, ref_matched, rtol=5e-3, atol=5e-3), (loss, ref_matched)
    assert jnp.allclose(loss, ref_exact, rtol=5e-2, atol=5e-2), (loss, ref_exact)

    # --- multi-tile case to exercise the (pass, row-tile) grid path ---
    n2, m2 = 256, 32
    a1 = jax.random.normal(k4, (n2, m2), dtype=jnp.float32)
    a2 = jax.random.normal(k5, (n2, m2), dtype=jnp.float32)
    lab = jax.random.uniform(k6, (n2, n2), dtype=jnp.float32)

    loss2 = jax.block_until_ready(sim_loss(a1, a2, lab, row_tile=64))
    ref2_matched = jax.block_until_ready(_sim_loss_ref(a1, a2, lab, jnp.bfloat16))
    ref2_exact = jax.block_until_ready(_sim_loss_ref(a1, a2, lab, jnp.float32))
    assert jnp.allclose(loss2, ref2_matched, rtol=1e-2, atol=1e-2), (loss2, ref2_matched)
    assert jnp.allclose(loss2, ref2_exact, rtol=5e-2, atol=5e-2), (loss2, ref2_exact)

    print("KERNEL_OK")
</pallas_src>

<mosaic_0001>
module attributes {stable_mosaic.version = 11 : i64} {
  func.func @_simloss_kernel(%arg0: i32, %arg1: i32, %arg2: memref<8x32xf32, #tpu.memory_space<vmem>>, %arg3: memref<8x32xf32, #tpu.memory_space<vmem>>, %arg4: memref<8x8xf32, #tpu.memory_space<vmem>>, %arg5: memref<1x1xf32, #tpu.memory_space<vmem>>, %arg6: memref<1x8xf32, #tpu.memory_space<vmem>>, %arg7: memref<1x8xf32, #tpu.memory_space<vmem>>) attributes {dimension_semantics = [#tpu.dimension_semantics<arbitrary>, #tpu.dimension_semantics<arbitrary>], iteration_bounds = array<i64: 2, 1>, scalar_prefetch = 0 : i64, scratch_operands = 2 : i64, tpu.core_type = #tpu.core_type<tc>, window_params = [{pipeline_mode = #tpu.pipeline_mode<synchronous>, transform_indices = @transform_0, window_bounds = array<i64: 8, 32>}, {transform_indices = @transform_1, window_bounds = array<i64: 8, 32>}, {transform_indices = @transform_2, window_bounds = array<i64: 8, 8>}, {pipeline_mode = #tpu.pipeline_mode<synchronous>, transform_indices = @transform_3, window_bounds = array<i64: 1, 1>}]} {
    %c0_i32 = arith.constant 0 : i32
    %0 = arith.cmpi eq, %arg0, %c0_i32 : i32
    %c0_i32_0 = arith.constant 0 : i32
    %1 = arith.cmpi eq, %arg1, %c0_i32_0 : i32
    %2 = arith.andi %0, %1 : i1
    %3 = arith.extui %2 : i1 to i32
    %c0_i32_1 = arith.constant 0 : i32
    %4 = arith.cmpi ne, %3, %c0_i32_1 : i32
    scf.if %4 {
      %cst_10 = arith.constant 0.000000e+00 : f32
      %17 = vector.broadcast %cst_10 : f32 to vector<1x1xf32>
      %c0_11 = arith.constant 0 : index
      %c0_12 = arith.constant 0 : index
      %18 = vector.load %arg5[%c0_11, %c0_12] : memref<1x1xf32, #tpu.memory_space<vmem>>, vector<1x1xf32>
      tpu.vector_store %arg5[%c0_11, %c0_12], %17 {strides = array<i32>} : memref<1x1xf32, #tpu.memory_space<vmem>>, vector<1x1xf32>,
      %cst_13 = arith.constant 0xFF800000 : f32
      %19 = vector.broadcast %cst_13 : f32 to vector<1x8xf32>
      %c0_14 = arith.constant 0 : index
      %c0_15 = arith.constant 0 : index
      %20 = vector.load %arg6[%c0_14, %c0_15] : memref<1x8xf32, #tpu.memory_space<vmem>>, vector<1x8xf32>
      tpu.vector_store %arg6[%c0_14, %c0_15], %19 {strides = array<i32>} : memref<1x8xf32, #tpu.memory_space<vmem>>, vector<1x8xf32>,
      %cst_16 = arith.constant 0.000000e+00 : f32
      %21 = vector.broadcast %cst_16 : f32 to vector<1x8xf32>
      %c0_17 = arith.constant 0 : index
      %c0_18 = arith.constant 0 : index
      %22 = vector.load %arg7[%c0_17, %c0_18] : memref<1x8xf32, #tpu.memory_space<vmem>>, vector<1x8xf32>
      tpu.vector_store %arg7[%c0_17, %c0_18], %21 {strides = array<i32>} : memref<1x8xf32, #tpu.memory_space<vmem>>, vector<1x8xf32>,
    } else {
    }
    %c0 = arith.constant 0 : index
    %c0_2 = arith.constant 0 : index
    %5 = vector.load %arg2[%c0, %c0_2] : memref<8x32xf32, #tpu.memory_space<vmem>>, vector<8x32xf32>
    %6 = arith.truncf %5 : vector<8x32xf32> to vector<8x32xbf16>
    %c0_3 = arith.constant 0 : index
    %c0_4 = arith.constant 0 : index
    %7 = vector.load %arg3[%c0_3, %c0_4] : memref<8x32xf32, #tpu.memory_space<vmem>>, vector<8x32xf32>
    %8 = arith.truncf %7 : vector<8x32xf32> to vector<8x32xbf16>
    %c0_5 = arith.constant 0 : index
    %c0_6 = arith.constant 0 : index
    %9 = vector.load %arg4[%c0_5, %c0_6] : memref<8x8xf32, #tpu.memory_space<vmem>>, vector<8x8xf32>
    %cst = arith.constant dense<0.000000e+00> : vector<8x8xf32>
    %10 = tpu.matmul %8, %6, %cst {dimension_numbers = #tpu.dot_dimension_numbers<[1], [1], [0], [0], [0, 0, 1, 0], [], []>} : vector<8x32xbf16>, vector<8x32xbf16>, vector<8x8xf32> -> vector<8x8xf32>
    %c0_i32_7 = arith.constant 0 : i32
    %11 = arith.cmpi eq, %arg0, %c0_i32_7 : i32
    %12 = arith.extui %11 : i1 to i32
    %c0_i32_8 = arith.constant 0 : i32
    %13 = arith.cmpi ne, %12, %c0_i32_8 : i32
    scf.if %13 {
      %cst_10 = arith.constant dense<0xFF800000> : vector<8xf32>
      %17 = vector.multi_reduction <maximumf>, %10, %cst_10 [1] : vector<8x8xf32> to vector<8xf32>
      %18 = vector.shape_cast %17 : vector<8xf32> to vector<8x1xf32>
      %19 = vector.broadcast %18 : vector<8x1xf32> to vector<8x8xf32>
      %20 = arith.subf %10, %19 : vector<8x8xf32>
      %21 = math.exp %20 : vector<8x8xf32>
      %cst_11 = arith.constant dense<0.000000e+00> : vector<8xf32>
      %22 = vector.multi_reduction <add>, %21, %cst_11 [1] : vector<8x8xf32> to vector<8xf32>
      %23 = vector.shape_cast %22 : vector<8xf32> to vector<8x1xf32>
      %24 = tpu.reciprocal %23 {approx = true} : vector<8x1xf32> -> vector<8x1xf32>
      %25 = vector.broadcast %24 : vector<8x1xf32> to vector<8x8xf32>
      %26 = arith.mulf %21, %25 : vector<8x8xf32>
      %c0_12 = arith.constant 0 : index
      %c0_13 = arith.constant 0 : index
      %27 = vector.load %arg5[%c0_12, %c0_13] : memref<1x1xf32, #tpu.memory_space<vmem>>, vector<1x1xf32>
      %cst_14 = arith.constant 0.000000e+00 : f32
      %28 = vector.broadcast %cst_14 : f32 to vector<8x8xf32>
      %29 = arith.subf %28, %9 : vector<8x8xf32>
      %cst_15 = arith.constant 9.99999974E-5 : f32
      %30 = vector.broadcast %cst_15 : f32 to vector<8x8xf32>
      %31 = arith.addf %26, %30 : vector<8x8xf32>
      %32 = math.log %31 : vector<8x8xf32>
      %33 = arith.mulf %29, %32 : vector<8x8xf32>
      %cst_16 = arith.constant dense<0.000000e+00> : vector<8xf32>
      %34 = vector.multi_reduction <add>, %33, %cst_16 [1] : vector<8x8xf32> to vector<8xf32>
      %35 = vector.shape_cast %34 : vector<8xf32> to vector<8x1xf32>
      %cst_17 = arith.constant dense<0.000000e+00> : vector<1xf32>
      %36 = vector.multi_reduction <add>, %35, %cst_17 [0] : vector<8x1xf32> to vector<1xf32>
      %37 = vector.shape_cast %36 : vector<1xf32> to vector<1x1xf32>
      %38 = arith.addf %27, %37 : vector<1x1xf32>
      %c0_18 = arith.constant 0 : index
      %c0_19 = arith.constant 0 : index
      %39 = vector.load %arg5[%c0_18, %c0_19] : memref<1x1xf32, #tpu.memory_space<vmem>>, vector<1x1xf32>
      tpu.vector_store %arg5[%c0_18, %c0_19], %38 {strides = array<i32>} : memref<1x1xf32, #tpu.memory_space<vmem>>, vector<1x1xf32>,
      %cst_20 = arith.constant dense<0xFF800000> : vector<8xf32>
      %40 = vector.multi_reduction <maximumf>, %10, %cst_20 [0] : vector<8x8xf32> to vector<8xf32>
      %41 = vector.shape_cast %40 : vector<8xf32> to vector<1x8xf32>
      %c0_21 = arith.constant 0 : index
      %c0_22 = arith.constant 0 : index
      %42 = vector.load %arg6[%c0_21, %c0_22] : memref<1x8xf32, #tpu.memory_space<vmem>>, vector<1x8xf32>
      %43 = arith.maximumf %42, %41 : vector<1x8xf32>
      %c0_23 = arith.constant 0 : index
      %c0_24 = arith.constant 0 : index
      %44 = vector.load %arg7[%c0_23, %c0_24] : memref<1x8xf32, #tpu.memory_space<vmem>>, vector<1x8xf32>
      %c0_25 = arith.constant 0 : index
      %c0_26 = arith.constant 0 : index
      %45 = vector.load %arg6[%c0_25, %c0_26] : memref<1x8xf32, #tpu.memory_space<vmem>>, vector<1x8xf32>
      %46 = arith.subf %45, %43 : vector<1x8xf32>
      %47 = math.exp %46 : vector<1x8xf32>
      %48 = arith.mulf %44, %47 : vector<1x8xf32>
      %49 = vector.broadcast %43 : vector<1x8xf32> to vector<8x8xf32>
      %50 = arith.subf %10, %49 : vector<8x8xf32>
      %51 = math.exp %50 : vector<8x8xf32>
      %cst_27 = arith.constant dense<0.000000e+00> : vector<8xf32>
      %52 = vector.multi_reduction <add>, %51, %cst_27 [0] : vector<8x8xf32> to vector<8xf32>
      %53 = vector.shape_cast %52 : vector<8xf32> to vector<1x8xf32>
      %54 = arith.addf %48, %53 : vector<1x8xf32>
      %c0_28 = arith.constant 0 : index
      %c0_29 = arith.constant 0 : index
      %55 = vector.load %arg7[%c0_28, %c0_29] : memref<1x8xf32, #tpu.memory_space<vmem>>, vector<1x8xf32>
      tpu.vector_store %arg7[%c0_28, %c0_29], %54 {strides = array<i32>} : memref<1x8xf32, #tpu.memory_space<vmem>>, vector<1x8xf32>,
      %c0_30 = arith.constant 0 : index
      %c0_31 = arith.constant 0 : index
      %56 = vector.load %arg6[%c0_30, %c0_31] : memref<1x8xf32, #tpu.memory_space<vmem>>, vector<1x8xf32>
      tpu.vector_store %arg6[%c0_30, %c0_31], %43 {strides = array<i32>} : memref<1x8xf32, #tpu.memory_space<vmem>>, vector<1x8xf32>,
    } else {
    }
    %c1_i32 = arith.constant 1 : i32
    %14 = arith.cmpi eq, %arg0, %c1_i32 : i32
    %15 = arith.extui %14 : i1 to i32
    %c0_i32_9 = arith.constant 0 : i32
    %16 = arith.cmpi ne, %15, %c0_i32_9 : i32
    scf.if %16 {
      %c0_10 = arith.constant 0 : index
      %c0_11 = arith.constant 0 : index
      %17 = vector.load %arg7[%c0_10, %c0_11] : memref<1x8xf32, #tpu.memory_space<vmem>>, vector<1x8xf32>
      %18 = tpu.reciprocal %17 {approx = true} : vector<1x8xf32> -> vector<1x8xf32>
      %c0_12 = arith.constant 0 : index
      %c0_13 = arith.constant 0 : index
      %19 = vector.load %arg6[%c0_12, %c0_13] : memref<1x8xf32, #tpu.memory_space<vmem>>, vector<1x8xf32>
      %20 = vector.broadcast %19 : vector<1x8xf32> to vector<8x8xf32>
      %21 = arith.subf %10, %20 : vector<8x8xf32>
      %22 = math.exp %21 : vector<8x8xf32>
      %23 = vector.broadcast %18 : vector<1x8xf32> to vector<8x8xf32>
      %24 = arith.mulf %22, %23 : vector<8x8xf32>
      %c0_14 = arith.constant 0 : index
      %c0_15 = arith.constant 0 : index
      %25 = vector.load %arg5[%c0_14, %c0_15] : memref<1x1xf32, #tpu.memory_space<vmem>>, vector<1x1xf32>
      %cst_16 = arith.constant 0.000000e+00 : f32
      %26 = vector.broadcast %cst_16 : f32 to vector<8x8xf32>
      %27 = arith.subf %26, %9 : vector<8x8xf32>
      %cst_17 = arith.constant 9.99999974E-5 : f32
      %28 = vector.broadcast %cst_17 : f32 to vector<8x8xf32>
      %29 = arith.addf %24, %28 : vector<8x8xf32>
      %30 = math.log %29 : vector<8x8xf32>
      %31 = arith.mulf %27, %30 : vector<8x8xf32>
      %cst_18 = arith.constant dense<0.000000e+00> : vector<8xf32>
      %32 = vector.multi_reduction <add>, %31, %cst_18 [1] : vector<8x8xf32> to vector<8xf32>
      %33 = vector.shape_cast %32 : vector<8xf32> to vector<8x1xf32>
      %cst_19 = arith.constant dense<0.000000e+00> : vector<1xf32>
      %34 = vector.multi_reduction <add>, %33, %cst_19 [0] : vector<8x1xf32> to vector<1xf32>
      %35 = vector.shape_cast %34 : vector<1xf32> to vector<1x1xf32>
      %36 = arith.addf %25, %35 : vector<1x1xf32>
      %c0_20 = arith.constant 0 : index
      %c0_21 = arith.constant 0 : index
      %37 = vector.load %arg5[%c0_20, %c0_21] : memref<1x1xf32, #tpu.memory_space<vmem>>, vector<1x1xf32>
      tpu.vector_store %arg5[%c0_20, %c0_21], %36 {strides = array<i32>} : memref<1x1xf32, #tpu.memory_space<vmem>>, vector<1x1xf32>,
    } else {
    }
    return
  }
  func.func @transform_0(%arg0: i32, %arg1: i32) -> (i32, i32) {
    %c0_i32 = arith.constant 0 : i32
    %c0_i32_0 = arith.constant 0 : i32
    %c0_i32_1 = arith.constant 0 : i32
    return %c0_i32, %c0_i32_0 : i32, i32
  }
  func.func @transform_1(%arg0: i32, %arg1: i32) -> (i32, i32) {
    %c0_i32 = arith.constant 0 : i32
    %c0_i32_0 = arith.constant 0 : i32
    return %arg1, %c0_i32 : i32, i32
  }
  func.func @transform_2(%arg0: i32, %arg1: i32) -> (i32, i32) {
    %c0_i32 = arith.constant 0 : i32
    %c0_i32_0 = arith.constant 0 : i32
    return %arg1, %c0_i32 : i32, i32
  }
  func.func @transform_3(%arg0: i32, %arg1: i32) -> (i32, i32) {
    %c0_i32 = arith.constant 0 : i32
    %c0_i32_0 = arith.constant 0 : i32
    %c0_i32_1 = arith.constant 0 : i32
    return %c0_i32, %c0_i32_0 : i32, i32
  }
}

</mosaic_0001>

<llo_original>
// kernel: tpu_custom_call.1
$region0: #{tpu_custom_call.1}
  #allocation0 [shape = 'u32[]', space=smem, size = 0x4, offset = 0x4, fixed_abs, tag = 'smem constant byte address 0x4 - core index']
  #allocation1 [shape = 'u32[144,128]{1,0:T(1,128)}', space=vmem, size = 0x12000, scoped, tag = 'internal scratch']
  #allocation2 [shape = 'f32[1,8]{1,0:T(1,128)}', space=vmem, size = 0x200, scoped, tag = 'scratch operand']
  #allocation3 [shape = 'f32[1,8]{1,0:T(1,128)}', space=vmem, size = 0x200, scoped, tag = 'scratch operand']
  %s0 = inlined_call_operand.hbm [shape: f32[8,32], index: 0, kind: input, shape index: {}]
  %s1 = inlined_call_operand.hbm [shape: f32[8,32], index: 1, kind: input, shape index: {}]
  %s2 = inlined_call_operand.hbm [shape: f32[8,8], index: 2, kind: input, shape index: {}]
  %s3 = inlined_call_operand.hbm [shape: f32[1,1], index: 3, kind: output, shape index: {}]
  %s4 = sld [smem:[#allocation0]]
  $region69: #{tpu_custom_call.1} parent=0
    _
  %s6 = ssub.s32 1, %s4
  %s7 = scalar_select 0, %s6, %s4
  $region1: #{tpu_custom_call.1} parent=0
    #allocation4 [shape = 'u8[4096]{0}', space=vmem, size = 0x1000, scoped, tag = 'input window, operand 0, single buffered']
    #allocation5 [shape = 's32[2]{0}', space=sflag, size = 0x8, scoped, tag = 'scoped memory for tpu_custom_call.1']
    #allocation6 [shape = 's32[2]{0}', space=sflag, size = 0x8, scoped, tag = 'scoped memory for tpu_custom_call.1']
    #allocation7 [shape = 'u8[4096]{0}', space=vmem, size = 0x1000, scoped, tag = 'input window, operand 1, single buffered']
    #allocation8 [shape = 's32[1]{0}', space=sflag, size = 0x4, scoped, tag = 'scoped memory for tpu_custom_call.1']
    #allocation9 [shape = 'u8[4096]{0}', space=vmem, size = 0x1000, scoped, tag = 'input window, operand 2, single buffered']
    #allocation10 [shape = 'u8[512]{0}', space=vmem, size = 0x400, scoped, tag = 'output window, operand 0, single buffered']
    %8 = vsyncpa [#allocation5], 0
    %9 = vsyncpa [#allocation8], 0
    %10 = vsyncpa [#allocation6], 0
    loop: start=0, step=1, limit=4
    $region2: #{tpu_custom_call.1} parent=1 // loop_pre_header
      _
    $region3: #{tpu_custom_call.1} parent=1 // loop_header
      %s12 = sphi 0, %s16
      %p13 = scmp.ge.s32.totalorder %s12, 4
      %s19 = sphi 0, %s31
      %s20 = sphi 0, %s27
      %s21 = sphi 0, %s19
      %s22 = sphi 0, %s20
      %s23 = sphi 0, %s21
      %s24 = sphi 0, %s22
      %s32 = sphi 0, %s32
      %s34 = sphi 0, %s32
      %s35 = sphi 0, %s34
      %s49 = sphi 0, %s35
      %s55 = sphi 0, %s57
      %s58 = sphi 0, %s55
      %s59 = sphi 0, %s58
      %s75 = sphi 0, %s59
      %s81 = sphi 0, %s83
      %s84 = sphi 0, %s81
      %s85 = sphi 0, %s84
      %s101 = sphi 0, %s85
      %s105 = sphi 0, %s105
      %s107 = sphi 0, %s105
      %s108 = sphi 0, %s107
      %s122 = sphi 0, %s108
    $region4: #{tpu_custom_call.1} parent=1 // loop_header_branch
      %15 = sbr.rel (%p13) target = $region8
    $region5: #{tpu_custom_call.1} parent=1 // loop_body
      %s17 = ssub.s32 %s12, 1
      %s18 = ssub.s32 %s12, 2
      %s25 = sadd.s32 1, %s20
      %p26 = scmp.ge.s32.totalorder %s25, 1
      %s27 = scalar_select %p26, 0, %s25
      %s28 = sadd.s32 1, %s19
      %s29 = scalar_select %p26, %s28, %s19
      %p30 = scmp.ge.s32.totalorder %s29, 2
      %s31 = scalar_select %p30, 0, %s29
      %s33 = sadd.s32 %s32, 1
      %p36 = scmp.eq.s32.totalorder %s12, 1
      %p37 = scmp.ne.s32.totalorder %s32, %s34
      %p38 = scmp.eq.s32.totalorder %s12, 0
      %p39 = por %p37, %p38
      %p40 = scmp.ne.s32.totalorder %s32, %s34
      %p41 = scmp.eq.s32.totalorder %s17, 1
      %p42 = por %p40, %p41
      %p43 = scmp.ne.s32.totalorder %s34, %s35
      %p44 = scmp.eq.s32.totalorder %s17, 0
      %p45 = por %p43, %p44
      %p46 = scmp.ne.s32.totalorder %s34, %s35
      %p47 = scmp.eq.s32.totalorder %s18, 1
      %p48 = por %p46, %p47
      %p50 = scmp.ne.s32.totalorder %s35, %s49
      %p51 = scmp.eq.s32.totalorder %s18, 0
      %p52 = por %p50, %p51
      %s53 = ssub.s32 %s20, %s27
      %p54 = scmp.eq.s32.totalorder %s53, 0
      %s56 = sadd.s32 %s55, 1
      %s57 = scalar_select %p54, %s55, %s56
      %p60 = pneg %p54
      %p61 = scmp.eq.s32.totalorder %s12, 1
      %p62 = por %p60, %p61
      %p63 = scmp.ne.s32.totalorder %s55, %s58
      %p64 = scmp.eq.s32.totalorder %s12, 0
      %p65 = por %p63, %p64
      %p66 = scmp.ne.s32.totalorder %s55, %s58
      %p67 = scmp.eq.s32.totalorder %s17, 1
      %p68 = por %p66, %p67
      %p69 = scmp.ne.s32.totalorder %s58, %s59
      %p70 = scmp.eq.s32.totalorder %s17, 0
      %p71 = por %p69, %p70
      %p72 = scmp.ne.s32.totalorder %s58, %s59
      %p73 = scmp.eq.s32.totalorder %s18, 1
      %p74 = por %p72, %p73
      %p76 = scmp.ne.s32.totalorder %s59, %s75
      %p77 = scmp.eq.s32.totalorder %s18, 0
      %p78 = por %p76, %p77
      %s79 = ssub.s32 %s20, %s27
      %p80 = scmp.eq.s32.totalorder %s79, 0
      %s82 = sadd.s32 %s81, 1
      %s83 = scalar_select %p80, %s81, %s82
      %p86 = pneg %p80
      %p87 = scmp.eq.s32.totalorder %s12, 1
      %p88 = por %p86, %p87
      %p89 = scmp.ne.s32.totalorder %s81, %s84
      %p90 = scmp.eq.s32.totalorder %s12, 0
      %p91 = por %p89, %p90
      %p92 = scmp.ne.s32.totalorder %s81, %s84
      %p93 = scmp.eq.s32.totalorder %s17, 1
      %p94 = por %p92, %p93
      %p95 = scmp.ne.s32.totalorder %s84, %s85
      %p96 = scmp.eq.s32.totalorder %s17, 0
      %p97 = por %p95, %p96
      %p98 = scmp.ne.s32.totalorder %s84, %s85
      %p99 = scmp.eq.s32.totalorder %s18, 1
      %p100 = por %p98, %p99
      %p102 = scmp.ne.s32.totalorder %s85, %s101
      %p103 = scmp.eq.s32.totalorder %s18, 0
      %p104 = por %p102, %p103
      %s106 = sadd.s32 %s105, 1
      %p109 = scmp.eq.s32.totalorder %s12, 1
      %p110 = scmp.ne.s32.totalorder %s105, %s107
      %p111 = scmp.eq.s32.totalorder %s12, 0
      %p112 = por %p110, %p111
      %p113 = scmp.ne.s32.totalorder %s105, %s107
      %p114 = scmp.eq.s32.totalorder %s17, 1
      %p115 = por %p113, %p114
      %p116 = scmp.ne.s32.totalorder %s107, %s108
      %p117 = scmp.eq.s32.totalorder %s17, 0
      %p118 = por %p116, %p117
      %p119 = scmp.ne.s32.totalorder %s107, %s108
      %p120 = scmp.eq.s32.totalorder %s18, 1
      %p121 = por %p119, %p120
      %p123 = scmp.ne.s32.totalorder %s108, %s122
      %p124 = scmp.eq.s32.totalorder %s18, 0
      %p125 = por %p123, %p124
      %p126 = scmp.le.s32.totalorder 1, %s12
      %p127 = scmp.lt.s32.totalorder %s12, 3
      %p128 = pnand %p126, %p127
      %p129 = pneg %p128
      // Predicated region
      $region9: #{tpu_custom_call.1} parent=5 // pred_check
        _
      $region10: #{tpu_custom_call.1} parent=5 // pred_check_branch
        %131 = sbr.rel (%p128) target = $region12
      $region11: #{tpu_custom_call.1} parent=5 // pred_region
        %s132 = ssub.s32 %s12, 1
        // Predicated region
        $region13: #{tpu_custom_call.1} parent=11 // pred_check
          %p133 = pneg %p45
        $region14: #{tpu_custom_call.1} parent=11 // pred_check_branch
          %135 = sbr.rel (%p133) target = $region16
        $region15: #{tpu_custom_call.1} parent=11 // pred_region
          %s137 = ssub.s32 128, 128
          %138 = vsyncadd [#allocation5], %s137
          %s140 = sshll.u32 [#allocation4], 4
          %s141 = int_to_ptr.vmem [resolvable:$true] %s140
          %143 = dma.hbm_to_vmem [thread:$0]  %s0, 128, %s141, [#allocation5]
        $region16: #{tpu_custom_call.1} parent=11 // pred_fallthru
          _
        // Predicated region
        $region17: #{tpu_custom_call.1} parent=11 // pred_check
          %p144 = pneg %p71
        $region18: #{tpu_custom_call.1} parent=11 // pred_check_branch
          %146 = sbr.rel (%p144) target = $region20
        $region19: #{tpu_custom_call.1} parent=11 // pred_region
          %s148 = ssub.s32 128, 128
          %149 = vsyncadd [#allocation8], %s148
          %s150 = smul.addr %s22, 128
          %s151 = scalar_lea.hbm %s1, %s150
          %s153 = sshll.u32 [#allocation7], 4
          %s154 = int_to_ptr.vmem [resolvable:$true] %s153
          %156 = dma.hbm_to_vmem [thread:$0]  %s151, 128, %s154, [#allocation8]
        $region20: #{tpu_custom_call.1} parent=11 // pred_fallthru
          _
        // Predicated region
        $region21: #{tpu_custom_call.1} parent=11 // pred_check
          %p157 = pneg %p97
        $region22: #{tpu_custom_call.1} parent=11 // pred_check_branch
          %159 = sbr.rel (%p157) target = $region24
        $region23: #{tpu_custom_call.1} parent=11 // pred_region
          %s161 = ssub.s32 128, 128
          %162 = vsyncadd [#allocation8], %s161
          %s163 = smul.addr %s22, 128
          %s164 = scalar_lea.hbm %s2, %s163
          %s166 = sshll.u32 [#allocation9], 4
          %s167 = int_to_ptr.vmem [resolvable:$true] %s166
          %169 = dma.hbm_to_vmem [thread:$0]  %s164, 128, %s167, [#allocation8]
        $region24: #{tpu_custom_call.1} parent=11 // pred_fallthru
          _
      $region12: #{tpu_custom_call.1} parent=5 // pred_fallthru
        _
      %p170 = scmp.lt.s32.totalorder %s12, 2
      // Predicated region
      $region25: #{tpu_custom_call.1} parent=5 // pred_check
        %p171 = pneg %p170
      $region26: #{tpu_custom_call.1} parent=5 // pred_check_branch
        %173 = sbr.rel (%p171) target = $region28
      $region27: #{tpu_custom_call.1} parent=5 // pred_region
        _
      $region28: #{tpu_custom_call.1} parent=5 // pred_fallthru
        _
      %p174 = scmp.le.s32.totalorder 1, %s12
      %p175 = scmp.lt.s32.totalorder %s12, 3
      %p176 = pnand %p174, %p175
      %p177 = pneg %p176
      // Predicated region
      $region29: #{tpu_custom_call.1} parent=5 // pred_check
        _
      $region30: #{tpu_custom_call.1} parent=5 // pred_check_branch
        %179 = sbr.rel (%p176) target = $region32
      $region31: #{tpu_custom_call.1} parent=5 // pred_region
        %s180 = ssub.s32 %s12, 1
        // Predicated region
        $region33: #{tpu_custom_call.1} parent=31 // pred_check
          %p181 = pneg %p45
        $region34: #{tpu_custom_call.1} parent=31 // pred_check_branch
          %183 = sbr.rel (%p181) target = $region36
        $region35: #{tpu_custom_call.1} parent=31 // pred_region
          %184 = dma.done [#allocation5], 128
        $region36: #{tpu_custom_call.1} parent=31 // pred_fallthru
          _
        // Predicated region
        $region37: #{tpu_custom_call.1} parent=31 // pred_check
          %p185 = pneg %p71
        $region38: #{tpu_custom_call.1} parent=31 // pred_check_branch
          %187 = sbr.rel (%p185) target = $region40
        $region39: #{tpu_custom_call.1} parent=31 // pred_region
          %188 = dma.done [#allocation8], 128
        $region40: #{tpu_custom_call.1} parent=31 // pred_fallthru
          _
        // Predicated region
        $region41: #{tpu_custom_call.1} parent=31 // pred_check
          %p189 = pneg %p97
        $region42: #{tpu_custom_call.1} parent=31 // pred_check_branch
          %191 = sbr.rel (%p189) target = $region44
        $region43: #{tpu_custom_call.1} parent=31 // pred_region
          %192 = dma.done [#allocation8], 128
        $region44: #{tpu_custom_call.1} parent=31 // pred_fallthru
          _
        %p193 = pneg %p45
        %p194 = pneg %p42
        %p195 = pneg %p71
        %p196 = pneg %p68
        %p197 = pneg %p97
        %p198 = pneg %p94
        %p199 = pneg %p118
        %p200 = pneg %p115
        %p202 = scmp.eq.s32.totalorder %s21, 0
        %p203 = scmp.eq.s32.totalorder %s22, 0
        %p204 = pnand %p202, %p203
        %p205 = pneg %p204
        // Predicated region
        $region45: #{tpu_custom_call.1} parent=31 // pred_check
          _
        $region46: #{tpu_custom_call.1} parent=31 // pred_check_branch
          %207 = sbr.rel (%p204) target = $region48
        $region47: #{tpu_custom_call.1} parent=31 // pred_region
          %vm208 = vcmask 0
          %209 = vst.msk [vmem:[#allocation10] sm:$0x1] %vm208, 0.0
          %vm210 = vcmask 57344
          %211 = vst.msk [vmem:[#allocation2] sm:$0x1] %vm210, -inf
          %212 = vst.msk [vmem:[#allocation3] sm:$0x1] %vm210, 0.0
        $region48: #{tpu_custom_call.1} parent=31 // pred_fallthru
          _
        %v213 = vld [vmem:[#allocation4] sm:$0xff]
        %v214 = vpack.c.bf16 %v213, %v213
        %v215 = vld [vmem:[#allocation7] sm:$0xff]
        %v216 = vpack.c.bf16 %v215, %v215
        %v217 = vld [vmem:[#allocation9] sm:$0xff]
        %vm218 = vcmask 261120
        %v220 = vsel %vm218, %v216, 0
        %v223 = vsel %vm218, %v214, 0
        %225 = vmatprep.subr.bf16.mxu0 0
        %226 = vmatpush1.bf16.xpose.msra.mxu0 0
        %227 = vmatprep.subr.bf16.mxu0 0
        %228 = vmatpush1.bf16.xpose.msra.mxu0 0
        %229 = vmatprep.subr.bf16.mxu0 0
        %230 = vmatpush1.bf16.xpose.msra.mxu0 0
        %231 = vmatprep.subr.bf16.mxu0 0
        %232 = vmatpush1.bf16.xpose.msra.mxu0 0
        %233 = vmatprep.subr.bf16.mxu0 0
        %234 = vmatpush1.bf16.xpose.msra.mxu0 0
        %235 = vmatprep.subr.bf16.mxu0 0
        %236 = vmatpush1.bf16.xpose.msra.mxu0 0
        %237 = vmatprep.subr.bf16.mxu0 0
        %238 = vmatpush1.bf16.xpose.msra.mxu0 0
        %239 = vmatprep.subr.bf16.mxu0 0
        %240 = vmatpush1.bf16.xpose.msra.mxu0 %v223
        %241 = vmatprep.subr.bf16.mxu0 0
        %242 = vmatpush2.bf16.xpose.msra.mxu0 0
        %243 = vmatprep.subr.bf16.mxu0 0
        %244 = vmatpush2.bf16.xpose.msra.mxu0 0
        %245 = vmatprep.subr.bf16.mxu0 0
        %246 = vmatpush2.bf16.xpose.msra.mxu0 0
        %247 = vmatprep.subr.bf16.mxu0 0
        %248 = vmatpush2.bf16.xpose.msra.mxu0 0
        %249 = vmatprep.subr.bf16.mxu0 0
        %250 = vmatpush2.bf16.xpose.msra.mxu0 0
        %251 = vmatprep.subr.bf16.mxu0 0
        %252 = vmatpush2.bf16.xpose.msra.mxu0 0
        %253 = vmatprep.subr.bf16.mxu0 0
        %254 = vmatpush2.bf16.xpose.msra.mxu0 0
        %255 = vmatprep.subr.bf16.mxu0 0
        %256 = vmatpush2.bf16.xpose.msra.mxu0 0
        %257 = vmatprep.mubr.bf16.mxu0 0
        %258 = vmatmul.mubr.bf16.gmra.mxu0 %v220
        %v259 = vpop.f32.mrf.mxu0
        %v260 = vadd.f32 0.0, %v259
        %v261 = vpop.f32.mrf.mxu0
        %v262 = vpop.f32.mrf.mxu0
        %v263 = vpop.f32.mrf.mxu0
        %264 = vdwg.mxu0
        // Predicated region
        $region49: #{tpu_custom_call.1} parent=31 // pred_check
          %p265 = pneg %p202
        $region50: #{tpu_custom_call.1} parent=31 // pred_check_branch
          %267 = sbr.rel (%p265) target = $region52
        $region51: #{tpu_custom_call.1} parent=31 // pred_region
          %vm268 = vcmask 64512
          %v269 = vsel %vm268, %v260, -inf
          %270 = vmax.xlane.f32.xlu0 %v269
          %v271 = vpop.xlane.xlu0 %270
          %v272 = vsub.f32 %v260, %v271
          %v273 = vmul.f32 %v272, 1.442695
          %v274 = vpow.pop %v273
          %v275 = vsel %vm268, %v274, 0.0
          %276 = vadd.xlane.f32.xlu0 %v275
          %v277 = vpop.xlane.xlu0 %276
          %v278 = vrcp.pop %v277
          %v279 = vmul.f32 %v274, %v278
          %v280 = vld [vmem:[#allocation10] sm:$0x1]
          %v281 = vsub.f32 0.0, %v217
          %v282 = vadd.f32 %v279, 0.0001
          %v283 = vlog2.pop %v282
          %v284 = vmul.f32 %v283, 0.6931472
          %v285 = vmul.f32 %v281, %v284
          %v286 = vsel %vm268, %v285, 0.0
          %287 = vadd.xlane.f32.xlu0 %v286
          %v288 = vpop.xlane.xlu0 %287
          %v289 = vrot.slane %v288, 4
          %v290 = vadd.f32 %v288, %v289
          %v291 = vrot.slane %v290, 2
          %v292 = vadd.f32 %v290, %v291
          %v293 = vrot.slane %v292, 1
          %v294 = vadd.f32 %v292, %v293
          %v295 = vadd.f32 %v280, %v294
          %vm296 = vcmask 0
          %297 = vst.msk [vmem:[#allocation10] sm:$0x1] %vm296, %v295
          %v298 = vrot.slane %v269, 4
          %v299 = vmax.f32 %v269, %v298
          %v300 = vrot.slane %v299, 2
          %v301 = vmax.f32 %v299, %v300
          %v302 = vrot.slane %v301, 1
          %v303 = vmax.f32 %v301, %v302
          %v304 = vld [vmem:[#allocation2] sm:$0x1]
          %v305 = vmax.f32 %v304, %v303
          %v306 = vld [vmem:[#allocation3] sm:$0x1]
          %v307 = vsub.f32 %v304, %v305
          %v308 = vmul.f32 %v307, 1.442695
          %v309 = vpow.pop %v308
          %v310 = vmul.f32 %v306, %v309
          %v312 = vlaneseq
          %v313 = vshrl.u32 %v312, 7
          %v314 = vsub.s32 0, %v313
          %v315 = vrot.slane %v305, %v314
          %v317 = vsub.f32 %v260, %v315
          %v318 = vmul.f32 %v317, 1.442695
          %v319 = vpow.pop %v318
          %v320 = vsel %vm268, %v319, 0.0
          %v321 = vrot.slane %v320, 4
          %v322 = vadd.f32 %v320, %v321
          %v323 = vrot.slane %v322, 2
          %v324 = vadd.f32 %v322, %v323
          %v325 = vrot.slane %v324, 1
          %v326 = vadd.f32 %v324, %v325
          %v327 = vadd.f32 %v310, %v326
          %vm328 = vcmask 57344
          %329 = vst.msk [vmem:[#allocation3] sm:$0x1] %vm328, %v327
          %330 = vst.msk [vmem:[#allocation2] sm:$0x1] %vm328, %v305
        $region52: #{tpu_custom_call.1} parent=31 // pred_fallthru
          _
        %p331 = scmp.eq.s32.totalorder %s21, 1
        // Predicated region
        $region53: #{tpu_custom_call.1} parent=31 // pred_check
          %p332 = pneg %p331
        $region54: #{tpu_custom_call.1} parent=31 // pred_check_branch
          %334 = sbr.rel (%p332) target = $region56
        $region55: #{tpu_custom_call.1} parent=31 // pred_region
          %v335 = vld [vmem:[#allocation3] sm:$0x1]
          %v336 = vrcp.pop %v335
          %v337 = vld [vmem:[#allocation2] sm:$0x1]
          %v339 = vlaneseq
          %v340 = vshrl.u32 %v339, 7
          %v341 = vsub.s32 0, %v340
          %v342 = vrot.slane %v337, %v341
          %v344 = vsub.f32 %v260, %v342
          %v345 = vmul.f32 %v344, 1.442695
          %v346 = vpow.pop %v345
          %v348 = vlaneseq
          %v349 = vshrl.u32 %v348, 7
          %v350 = vsub.s32 0, %v349
          %v351 = vrot.slane %v336, %v350
          %v353 = vmul.f32 %v346, %v351
          %v354 = vld [vmem:[#allocation10] sm:$0x1]
          %v355 = vsub.f32 0.0, %v217
          %v356 = vadd.f32 %v353, 0.0001
          %v357 = vlog2.pop %v356
          %v358 = vmul.f32 %v357, 0.6931472
          %v359 = vmul.f32 %v355, %v358
          %vm360 = vcmask 64512
          %v361 = vsel %vm360, %v359, 0.0
          %362 = vadd.xlane.f32.xlu0 %v361
          %v363 = vpop.xlane.xlu0 %362
          %v364 = vrot.slane %v363, 4
          %v365 = vadd.f32 %v363, %v364
          %v366 = vrot.slane %v365, 2
          %v367 = vadd.f32 %v365, %v366
          %v368 = vrot.slane %v367, 1
          %v369 = vadd.f32 %v367, %v368
          %v370 = vadd.f32 %v354, %v369
          %vm371 = vcmask 0
          %372 = vst.msk [vmem:[#allocation10] sm:$0x1] %vm371, %v370
        $region56: #{tpu_custom_call.1} parent=31 // pred_fallthru
          _
        // Predicated region
        $region57: #{tpu_custom_call.1} parent=31 // pred_check
          %p373 = pneg %p115
        $region58: #{tpu_custom_call.1} parent=31 // pred_check_branch
          %375 = sbr.rel (%p373) target = $region60
        $region59: #{tpu_custom_call.1} parent=31 // pred_region
          %s377 = ssub.s32 16, 16
          %378 = vsyncadd [#allocation6], %s377
          %s380 = sshll.u32 [#allocation10], 4
          %s381 = int_to_ptr.vmem [resolvable:$true] %s380
          %383 = dma.vmem_to_hbm [thread:$0]  %s381, 16, %s3, [#allocation6]
        $region60: #{tpu_custom_call.1} parent=31 // pred_fallthru
          _
        // Predicated region
        $region61: #{tpu_custom_call.1} parent=31 // pred_check
          %p384 = pneg %p115
        $region62: #{tpu_custom_call.1} parent=31 // pred_check_branch
          %386 = sbr.rel (%p384) target = $region64
        $region63: #{tpu_custom_call.1} parent=31 // pred_region
          %387 = dma.done [#allocation6], 16
        $region64: #{tpu_custom_call.1} parent=31 // pred_fallthru
          _
      $region32: #{tpu_custom_call.1} parent=5 // pred_fallthru
        _
      %p388 = scmp.le.s32.totalorder 2, %s12
      // Predicated region
      $region65: #{tpu_custom_call.1} parent=5 // pred_check
        %p389 = pneg %p388
      $region66: #{tpu_custom_call.1} parent=5 // pred_check_branch
        %391 = sbr.rel (%p389) target = $region68
      $region67: #{tpu_custom_call.1} parent=5 // pred_region
        %s392 = ssub.s32 %s12, 2
      $region68: #{tpu_custom_call.1} parent=5 // pred_fallthru
        _
    $region6: #{tpu_custom_call.1} parent=1 // loop_footer
      %s16 = sadd.s32 1, %s12
    $region7: #{tpu_custom_call.1} parent=1 // loop_footer_branch
      %11 = sbr.rel target = $region3
    $region8: #{tpu_custom_call.1} parent=1 // loop_exit
      _
    %393 = vsyncpa [#allocation5], 1
    %s394 = scalar_lea.sflag [#allocation5], 1
    %395 = vsyncpa %s394, 1
    %396 = vsyncpa [#allocation8], 1
    %397 = vsyncpa [#allocation6], 1
    %s398 = scalar_lea.sflag [#allocation6], 1
    %399 = vsyncpa %s398, 1

</llo_original>
